<compile_context>
chip_gen: v6e
topology: v6e:2x2x1
jax: 0.10.0
libtpu: 0.0.40
codegen_flags: <defaults>
</compile_context>

<pallas_src>
import functools

import jax
import jax.numpy as jnp
from jax import lax
from jax.experimental import pallas as pl
from jax.experimental.pallas import tpu as pltpu

N_FEATURES = 30
N_CLASSES = 3
LAYER_DIMS = [N_FEATURES, 128, 64, 32, 16, N_CLASSES]
N_LAYERS = len(LAYER_DIMS) - 1      # 5 Linear layers; BN+ReLU after the first 4
PAD = 128                           # lane-dense hidden width inside the kernel
OUT_ROWS = 8                        # sublane-padded logit rows (3 real classes)
N_VEC_ROWS = 16                     # rows 0-3 biases, 4-7 gammas, 8-11 betas, 12-15 zero
BN_EPS = 1e-5
TILE_B = 256                        # batch rows processed per in-kernel tile


def _make_tiles(batch):
    tiles, start = [], 0
    while start < batch:
        size = min(TILE_B, batch - start)
        tiles.append((start, size))
        start += size
    return tuple(tiles)


def _mlp_kernel(x_ref, w1_ref, wmid_ref, w5t_ref, vec_ref, b5_ref, o_ref,
                z_buf, h_buf, *, tiles, batch):
    """Whole forward pass in one invocation (grid=()).

    x_ref   : (B, 30)       f32   raw input (padding fused via the K=30 matmul)
    w1_ref  : (30, 128)     f32   first Linear weight
    wmid_ref: (3, 128, 128) bf16  Linear weights 2..4, zero-padded to 128x128
    w5t_ref : (8, 128)      bf16  last Linear weight, transposed + zero-padded
    vec_ref : (16, 128)     f32   rows 0-3 biases, 4-7 BN gammas, 8-11 BN betas
    b5_ref  : (8, 1)        f32   last-layer bias as a column (3 real rows)
    o_ref   : (8, B)        f32   transposed logits; rows [:3] are real
    z_buf   : (B, 128)      f32   scratch: pre-BN activations of the current layer
    h_buf   : (B, 128)      bf16  scratch: post-BN/ReLU activations (next layer input)
    """
    inv_b = 1.0 / batch

    def bn_layer(layer, w):
        bias = vec_ref[layer:layer + 1, :]
        gamma = vec_ref[4 + layer:5 + layer, :]
        beta = vec_ref[8 + layer:9 + layer, :]

        # Pass 1: matmul + bias -> z scratch, single-pass sum / sum-of-squares.
        # Static unroll over tiles (== fori_loop(unroll=True)); per-tile values die
        # each iteration, so the live-vreg footprint is bounded by one tile.
        ssum = jnp.zeros((1, PAD), jnp.float32)
        ssq = jnp.zeros((1, PAD), jnp.float32)
        for st, sz in tiles:
            if layer == 0:
                ht = x_ref[st:st + sz, :]          # (sz, 30) f32, K=30 matmul
            else:
                ht = h_buf[st:st + sz, :]          # (sz, 128) bf16
            zt = jnp.dot(ht, w, preferred_element_type=jnp.float32) + bias
            z_buf[st:st + sz, :] = zt
            ssum = ssum + jnp.sum(zt, axis=0, keepdims=True)
            ssq = ssq + jnp.sum(zt * zt, axis=0, keepdims=True)

        # Training-mode BatchNorm1d (biased batch variance), folded into one FMA.
        mu = ssum * inv_b
        var = ssq * inv_b - mu * mu
        s = gamma * lax.rsqrt(var + BN_EPS)        # rsqrt rides the EUP slot
        t = beta - mu * s

        # Pass 2: BN + ReLU epilogue, emitting bf16 activations directly.
        for st, sz in tiles:
            zt = z_buf[st:st + sz, :]
            h_buf[st:st + sz, :] = jnp.maximum(zt * s + t, 0.0).astype(jnp.bfloat16)

    bn_layer(0, w1_ref[...])
    for i in range(1, N_LAYERS - 1):
        bn_layer(i, wmid_ref[i - 1])

    # Last layer in transposed orientation: out_t[c, b] = sum_k W5^T[c, k] * h[b, k]
    # (A @ B^T on the MXU), so the HBM writeback is an (8, B) slab instead of (B, 128).
    w5t = w5t_ref[...]
    b5 = b5_ref[...]
    for st, sz in tiles:
        ht = h_buf[st:st + sz, :]
        ot = lax.dot_general(w5t, ht, (((1,), (1,)), ((), ())),
                             preferred_element_type=jnp.float32)     # (8, sz)
        o_ref[:, st:st + sz] = ot + b5


def init_params(key):
    """PyTorch-like init: Linear U(+-1/sqrt(fan_in)); BN gamma=1, beta=0."""
    params = []
    keys = jax.random.split(key, 2 * N_LAYERS)
    for i in range(N_LAYERS):
        fan_in, fan_out = LAYER_DIMS[i], LAYER_DIMS[i + 1]
        bound = 1.0 / (fan_in ** 0.5)
        w = jax.random.uniform(keys[2 * i], (fan_in, fan_out),
                               minval=-bound, maxval=bound, dtype=jnp.float32)
        b = jax.random.uniform(keys[2 * i + 1], (1, fan_out),
                               minval=-bound, maxval=bound, dtype=jnp.float32)
        params += [w, b]
        if i < N_LAYERS - 1:
            params += [jnp.ones((1, fan_out), jnp.float32),
                       jnp.zeros((1, fan_out), jnp.float32)]
    return params


def pack_params(params):
    """Pack the flat parameter list into lane-dense (mostly bf16) slabs."""
    vec = jnp.zeros((N_VEC_ROWS, PAD), jnp.float32)
    w_mid = []
    w1 = w5t = b5col = None
    idx = 0
    for i in range(N_LAYERS):
        w, b = params[idx], params[idx + 1]
        idx += 2
        d_in, d_out = w.shape
        if i == 0:
            w1 = w.astype(jnp.float32)                                   # (30, 128)
        elif i < N_LAYERS - 1:
            w_mid.append(jnp.zeros((PAD, PAD), jnp.float32).at[:d_in, :d_out].set(w))
        else:
            w5t = (jnp.zeros((OUT_ROWS, PAD), jnp.float32)
                   .at[:d_out, :d_in].set(w.T))                          # (8, 128)
            b5col = (jnp.zeros((OUT_ROWS, 1), jnp.float32)
                     .at[:d_out, 0].set(b.reshape(-1)))                  # (8, 1)
        if i < N_LAYERS - 1:
            g, be = params[idx], params[idx + 1]
            idx += 2
            vec = vec.at[i, :d_out].set(b.reshape(-1))
            vec = vec.at[4 + i, :d_out].set(g.reshape(-1))
            vec = vec.at[8 + i, :d_out].set(be.reshape(-1))
    w_mid = jnp.stack(w_mid, axis=0).astype(jnp.bfloat16)                # (3, 128, 128)
    return w1, w_mid, w5t.astype(jnp.bfloat16), vec, b5col


@jax.jit
def simple_classification_forward(x, w1, w_mid, w5t, vec_slab, b5col):
    batch = x.shape[0]
    tiles = _make_tiles(batch)

    def rup(v, m):
        return (v + m - 1) // m * m

    param_bytes = sum(int(a.size) * a.dtype.itemsize
                      for a in (w1, w_mid, w5t, vec_slab, b5col))
    act_bytes = rup(batch, 8) * PAD * (4 + 4 + 2)   # x vmem buffer + z scratch + h scratch
    out_bytes = OUT_ROWS * rup(batch, 128) * 4
    vmem_limit = int(min(64 * 2**20,
                         max(16 * 2**20, 2 * (param_bytes + act_bytes + out_bytes))))
    # TODO(synk): if the budget above ever exceeds ~64 MiB (v7x physical VMEM), split
    # the batch across multiple pallas_calls (or add a batch-tiled grid with a global
    # two-pass sum/sumsq reduction so training-mode BN statistics stay exact).

    cost = pl.CostEstimate(
        flops=2 * batch * (N_FEATURES * PAD + 3 * PAD * PAD + PAD * OUT_ROWS),
        transcendentals=4 * PAD,
        bytes_accessed=batch * N_FEATURES * 4 + param_bytes + OUT_ROWS * batch * 4,
    )

    vmem_spec = pl.BlockSpec(memory_space=pltpu.MemorySpace.VMEM)
    out_t = pl.pallas_call(
        functools.partial(_mlp_kernel, tiles=tiles, batch=batch),
        out_shape=jax.ShapeDtypeStruct((OUT_ROWS, batch), jnp.float32),
        in_specs=[vmem_spec] * 6,
        out_specs=vmem_spec,
        scratch_shapes=[pltpu.VMEM((batch, PAD), jnp.float32),
                        pltpu.VMEM((batch, PAD), jnp.bfloat16)],
        compiler_params=pltpu.CompilerParams(vmem_limit_bytes=vmem_limit),
        cost_estimate=cost,
    )(x, w1, w_mid, w5t, vec_slab, b5col)

    # Tiny consumer-side slice/transpose of the (8, B) slab -> (B, 3) logits.
    return out_t[:N_CLASSES, :].T


def reference_forward(x, params):
    """Pure-JAX reference with the kernel's precision policy (fp32 first layer,
    bf16 weights/activations elsewhere, fp32 accumulation and fp32 BN statistics)."""
    h = x.astype(jnp.float32)
    idx = 0
    for i in range(N_LAYERS):
        w, b = params[idx], params[idx + 1]
        idx += 2
        if i == 0:
            z = h @ w + b
        else:
            z = jnp.dot(h.astype(jnp.bfloat16), w.astype(jnp.bfloat16),
                        preferred_element_type=jnp.float32) + b
        if i < N_LAYERS - 1:
            g, be = params[idx], params[idx + 1]
            idx += 2
            mu = jnp.mean(z, axis=0, keepdims=True)
            var = jnp.mean((z - mu) ** 2, axis=0, keepdims=True)
            h = jnp.maximum((z - mu) / jnp.sqrt(var + BN_EPS) * g + be, 0.0)
        else:
            return z


if __name__ == "__main__":
    key = jax.random.PRNGKey(0)
    k_x1, k_x2, k_p = jax.random.split(key, 3)
    params = init_params(k_p)
    packed = pack_params(params)

    # Small batch (single in-kernel tile) and a >TILE_B batch (multi-tile + ragged tail).
    for k_x, batch in ((k_x1, 8), (k_x2, 264)):
        x = jax.random.normal(k_x, (batch, N_FEATURES), dtype=jnp.float32)
        out = jax.block_until_ready(simple_classification_forward(x, *packed))
        ref = reference_forward(x, params)
        assert out.shape == (batch, N_CLASSES), out.shape
        max_err = float(jnp.max(jnp.abs(out - ref)))
        assert jnp.allclose(out, ref, atol=1e-2, rtol=1e-2), max_err

    print("KERNEL_OK")
</pallas_src>

<mosaic_0001>
module attributes {stable_mosaic.version = 11 : i64} {
  func.func @_mlp_kernel(%arg0: memref<8x30xf32, #tpu.memory_space<vmem>>, %arg1: memref<30x128xf32, #tpu.memory_space<vmem>>, %arg2: memref<3x128x128xbf16, #tpu.memory_space<vmem>>, %arg3: memref<8x128xbf16, #tpu.memory_space<vmem>>, %arg4: memref<16x128xf32, #tpu.memory_space<vmem>>, %arg5: memref<8x1xf32, #tpu.memory_space<vmem>>, %arg6: memref<8x8xf32, #tpu.memory_space<vmem>>, %arg7: memref<8x128xf32, #tpu.memory_space<vmem>>, %arg8: memref<8x128xbf16, #tpu.memory_space<vmem>>) attributes {dimension_semantics = [], scalar_prefetch = 0 : i64, scratch_operands = 2 : i64, tpu.core_type = #tpu.core_type<tc>} {
    %c0 = arith.constant 0 : index
    %c0_0 = arith.constant 0 : index
    %0 = vector.load %arg1[%c0, %c0_0] : memref<30x128xf32, #tpu.memory_space<vmem>>, vector<30x128xf32>
    %c0_1 = arith.constant 0 : index
    %c0_2 = arith.constant 0 : index
    %1 = vector.load %arg4[%c0_1, %c0_2] : memref<16x128xf32, #tpu.memory_space<vmem>>, vector<1x128xf32>
    %c4 = arith.constant 4 : index
    %c0_3 = arith.constant 0 : index
    %2 = vector.load %arg4[%c4, %c0_3] : memref<16x128xf32, #tpu.memory_space<vmem>>, vector<1x128xf32>
    %c8 = arith.constant 8 : index
    %c0_4 = arith.constant 0 : index
    %3 = vector.load %arg4[%c8, %c0_4] : memref<16x128xf32, #tpu.memory_space<vmem>>, vector<1x128xf32>
    %cst = arith.constant 0.000000e+00 : f32
    %4 = vector.broadcast %cst : f32 to vector<1x128xf32>
    %cst_5 = arith.constant 0.000000e+00 : f32
    %5 = vector.broadcast %cst_5 : f32 to vector<1x128xf32>
    %c0_6 = arith.constant 0 : index
    %c0_7 = arith.constant 0 : index
    %6 = vector.load %arg0[%c0_6, %c0_7] : memref<8x30xf32, #tpu.memory_space<vmem>>, vector<8x30xf32>
    %cst_8 = arith.constant dense<0.000000e+00> : vector<8x128xf32>
    %7 = tpu.matmul %6, %0, %cst_8 {dimension_numbers = #tpu.dot_dimension_numbers<[1], [0], [0], [1], [0, 0, 1, 1], [], []>} : vector<8x30xf32>, vector<30x128xf32>, vector<8x128xf32> -> vector<8x128xf32>
    %8 = vector.broadcast %1 : vector<1x128xf32> to vector<8x128xf32>
    %9 = arith.addf %7, %8 : vector<8x128xf32>
    %c0_9 = arith.constant 0 : index
    %c0_10 = arith.constant 0 : index
    %10 = vector.load %arg7[%c0_9, %c0_10] : memref<8x128xf32, #tpu.memory_space<vmem>>, vector<8x128xf32>
    tpu.vector_store %arg7[%c0_9, %c0_10], %9 {strides = array<i32>} : memref<8x128xf32, #tpu.memory_space<vmem>>, vector<8x128xf32>,
    %cst_11 = arith.constant dense<0.000000e+00> : vector<128xf32>
    %11 = vector.multi_reduction <add>, %9, %cst_11 [0] : vector<8x128xf32> to vector<128xf32>
    %12 = vector.shape_cast %11 : vector<128xf32> to vector<1x128xf32>
    %13 = arith.addf %4, %12 : vector<1x128xf32>
    %14 = arith.mulf %9, %9 : vector<8x128xf32>
    %cst_12 = arith.constant dense<0.000000e+00> : vector<128xf32>
    %15 = vector.multi_reduction <add>, %14, %cst_12 [0] : vector<8x128xf32> to vector<128xf32>
    %16 = vector.shape_cast %15 : vector<128xf32> to vector<1x128xf32>
    %17 = arith.addf %5, %16 : vector<1x128xf32>
    %cst_13 = arith.constant 1.250000e-01 : f32
    %18 = vector.broadcast %cst_13 : f32 to vector<1x128xf32>
    %19 = arith.mulf %13, %18 : vector<1x128xf32>
    %cst_14 = arith.constant 1.250000e-01 : f32
    %20 = vector.broadcast %cst_14 : f32 to vector<1x128xf32>
    %21 = arith.mulf %17, %20 : vector<1x128xf32>
    %22 = arith.mulf %19, %19 : vector<1x128xf32>
    %23 = arith.subf %21, %22 : vector<1x128xf32>
    %cst_15 = arith.constant 9.99999974E-6 : f32
    %24 = vector.broadcast %cst_15 : f32 to vector<1x128xf32>
    %25 = arith.addf %23, %24 : vector<1x128xf32>
    %26 = math.rsqrt %25 : vector<1x128xf32>
    %27 = arith.mulf %2, %26 : vector<1x128xf32>
    %28 = arith.mulf %19, %27 : vector<1x128xf32>
    %29 = arith.subf %3, %28 : vector<1x128xf32>
    %c0_16 = arith.constant 0 : index
    %c0_17 = arith.constant 0 : index
    %30 = vector.load %arg7[%c0_16, %c0_17] : memref<8x128xf32, #tpu.memory_space<vmem>>, vector<8x128xf32>
    %31 = vector.broadcast %27 : vector<1x128xf32> to vector<8x128xf32>
    %32 = arith.mulf %30, %31 : vector<8x128xf32>
    %33 = vector.broadcast %29 : vector<1x128xf32> to vector<8x128xf32>
    %34 = arith.addf %32, %33 : vector<8x128xf32>
    %cst_18 = arith.constant 0.000000e+00 : f32
    %35 = vector.broadcast %cst_18 : f32 to vector<8x128xf32>
    %36 = arith.maximumf %34, %35 : vector<8x128xf32>
    %37 = arith.truncf %36 : vector<8x128xf32> to vector<8x128xbf16>
    %c0_19 = arith.constant 0 : index
    %c0_20 = arith.constant 0 : index
    %38 = vector.load %arg8[%c0_19, %c0_20] : memref<8x128xbf16, #tpu.memory_space<vmem>>, vector<8x128xbf16>
    tpu.vector_store %arg8[%c0_19, %c0_20], %37 {strides = array<i32>} : memref<8x128xbf16, #tpu.memory_space<vmem>>, vector<8x128xbf16>,
    %c0_21 = arith.constant 0 : index
    %c0_22 = arith.constant 0 : index
    %c0_23 = arith.constant 0 : index
    %39 = vector.load %arg2[%c0_21, %c0_22, %c0_23] : memref<3x128x128xbf16, #tpu.memory_space<vmem>>, vector<1x128x128xbf16>
    %40 = vector.shape_cast %39 : vector<1x128x128xbf16> to vector<128x128xbf16>
    %c1 = arith.constant 1 : index
    %c0_24 = arith.constant 0 : index
    %41 = vector.load %arg4[%c1, %c0_24] : memref<16x128xf32, #tpu.memory_space<vmem>>, vector<1x128xf32>
    %c5 = arith.constant 5 : index
    %c0_25 = arith.constant 0 : index
    %42 = vector.load %arg4[%c5, %c0_25] : memref<16x128xf32, #tpu.memory_space<vmem>>, vector<1x128xf32>
    %c9 = arith.constant 9 : index
    %c0_26 = arith.constant 0 : index
    %43 = vector.load %arg4[%c9, %c0_26] : memref<16x128xf32, #tpu.memory_space<vmem>>, vector<1x128xf32>
    %cst_27 = arith.constant 0.000000e+00 : f32
    %44 = vector.broadcast %cst_27 : f32 to vector<1x128xf32>
    %cst_28 = arith.constant 0.000000e+00 : f32
    %45 = vector.broadcast %cst_28 : f32 to vector<1x128xf32>
    %c0_29 = arith.constant 0 : index
    %c0_30 = arith.constant 0 : index
    %46 = vector.load %arg8[%c0_29, %c0_30] : memref<8x128xbf16, #tpu.memory_space<vmem>>, vector<8x128xbf16>
    %cst_31 = arith.constant dense<0.000000e+00> : vector<8x128xf32>
    %47 = tpu.matmul %46, %40, %cst_31 {dimension_numbers = #tpu.dot_dimension_numbers<[1], [0], [0], [1], [0, 0, 1, 1], [], []>} : vector<8x128xbf16>, vector<128x128xbf16>, vector<8x128xf32> -> vector<8x128xf32>
    %48 = vector.broadcast %41 : vector<1x128xf32> to vector<8x128xf32>
    %49 = arith.addf %47, %48 : vector<8x128xf32>
    %c0_32 = arith.constant 0 : index
    %c0_33 = arith.constant 0 : index
    %50 = vector.load %arg7[%c0_32, %c0_33] : memref<8x128xf32, #tpu.memory_space<vmem>>, vector<8x128xf32>
    tpu.vector_store %arg7[%c0_32, %c0_33], %49 {strides = array<i32>} : memref<8x128xf32, #tpu.memory_space<vmem>>, vector<8x128xf32>,
    %cst_34 = arith.constant dense<0.000000e+00> : vector<128xf32>
    %51 = vector.multi_reduction <add>, %49, %cst_34 [0] : vector<8x128xf32> to vector<128xf32>
    %52 = vector.shape_cast %51 : vector<128xf32> to vector<1x128xf32>
    %53 = arith.addf %44, %52 : vector<1x128xf32>
    %54 = arith.mulf %49, %49 : vector<8x128xf32>
    %cst_35 = arith.constant dense<0.000000e+00> : vector<128xf32>
    %55 = vector.multi_reduction <add>, %54, %cst_35 [0] : vector<8x128xf32> to vector<128xf32>
    %56 = vector.shape_cast %55 : vector<128xf32> to vector<1x128xf32>
    %57 = arith.addf %45, %56 : vector<1x128xf32>
    %cst_36 = arith.constant 1.250000e-01 : f32
    %58 = vector.broadcast %cst_36 : f32 to vector<1x128xf32>
    %59 = arith.mulf %53, %58 : vector<1x128xf32>
    %cst_37 = arith.constant 1.250000e-01 : f32
    %60 = vector.broadcast %cst_37 : f32 to vector<1x128xf32>
    %61 = arith.mulf %57, %60 : vector<1x128xf32>
    %62 = arith.mulf %59, %59 : vector<1x128xf32>
    %63 = arith.subf %61, %62 : vector<1x128xf32>
    %cst_38 = arith.constant 9.99999974E-6 : f32
    %64 = vector.broadcast %cst_38 : f32 to vector<1x128xf32>
    %65 = arith.addf %63, %64 : vector<1x128xf32>
    %66 = math.rsqrt %65 : vector<1x128xf32>
    %67 = arith.mulf %42, %66 : vector<1x128xf32>
    %68 = arith.mulf %59, %67 : vector<1x128xf32>
    %69 = arith.subf %43, %68 : vector<1x128xf32>
    %c0_39 = arith.constant 0 : index
    %c0_40 = arith.constant 0 : index
    %70 = vector.load %arg7[%c0_39, %c0_40] : memref<8x128xf32, #tpu.memory_space<vmem>>, vector<8x128xf32>
    %71 = vector.broadcast %67 : vector<1x128xf32> to vector<8x128xf32>
    %72 = arith.mulf %70, %71 : vector<8x128xf32>
    %73 = vector.broadcast %69 : vector<1x128xf32> to vector<8x128xf32>
    %74 = arith.addf %72, %73 : vector<8x128xf32>
    %cst_41 = arith.constant 0.000000e+00 : f32
    %75 = vector.broadcast %cst_41 : f32 to vector<8x128xf32>
    %76 = arith.maximumf %74, %75 : vector<8x128xf32>
    %77 = arith.truncf %76 : vector<8x128xf32> to vector<8x128xbf16>
    %c0_42 = arith.constant 0 : index
    %c0_43 = arith.constant 0 : index
    %78 = vector.load %arg8[%c0_42, %c0_43] : memref<8x128xbf16, #tpu.memory_space<vmem>>, vector<8x128xbf16>
    tpu.vector_store %arg8[%c0_42, %c0_43], %77 {strides = array<i32>} : memref<8x128xbf16, #tpu.memory_space<vmem>>, vector<8x128xbf16>,
    %c1_44 = arith.constant 1 : index
    %c0_45 = arith.constant 0 : index
    %c0_46 = arith.constant 0 : index
    %79 = vector.load %arg2[%c1_44, %c0_45, %c0_46] : memref<3x128x128xbf16, #tpu.memory_space<vmem>>, vector<1x128x128xbf16>
    %80 = vector.shape_cast %79 : vector<1x128x128xbf16> to vector<128x128xbf16>
    %c2 = arith.constant 2 : index
    %c0_47 = arith.constant 0 : index
    %81 = vector.load %arg4[%c2, %c0_47] : memref<16x128xf32, #tpu.memory_space<vmem>>, vector<1x128xf32>
    %c6 = arith.constant 6 : index
    %c0_48 = arith.constant 0 : index
    %82 = vector.load %arg4[%c6, %c0_48] : memref<16x128xf32, #tpu.memory_space<vmem>>, vector<1x128xf32>
    %c10 = arith.constant 10 : index
    %c0_49 = arith.constant 0 : index
    %83 = vector.load %arg4[%c10, %c0_49] : memref<16x128xf32, #tpu.memory_space<vmem>>, vector<1x128xf32>
    %cst_50 = arith.constant 0.000000e+00 : f32
    %84 = vector.broadcast %cst_50 : f32 to vector<1x128xf32>
    %cst_51 = arith.constant 0.000000e+00 : f32
    %85 = vector.broadcast %cst_51 : f32 to vector<1x128xf32>
    %c0_52 = arith.constant 0 : index
    %c0_53 = arith.constant 0 : index
    %86 = vector.load %arg8[%c0_52, %c0_53] : memref<8x128xbf16, #tpu.memory_space<vmem>>, vector<8x128xbf16>
    %cst_54 = arith.constant dense<0.000000e+00> : vector<8x128xf32>
    %87 = tpu.matmul %86, %80, %cst_54 {dimension_numbers = #tpu.dot_dimension_numbers<[1], [0], [0], [1], [0, 0, 1, 1], [], []>} : vector<8x128xbf16>, vector<128x128xbf16>, vector<8x128xf32> -> vector<8x128xf32>
    %88 = vector.broadcast %81 : vector<1x128xf32> to vector<8x128xf32>
    %89 = arith.addf %87, %88 : vector<8x128xf32>
    %c0_55 = arith.constant 0 : index
    %c0_56 = arith.constant 0 : index
    %90 = vector.load %arg7[%c0_55, %c0_56] : memref<8x128xf32, #tpu.memory_space<vmem>>, vector<8x128xf32>
    tpu.vector_store %arg7[%c0_55, %c0_56], %89 {strides = array<i32>} : memref<8x128xf32, #tpu.memory_space<vmem>>, vector<8x128xf32>,
    %cst_57 = arith.constant dense<0.000000e+00> : vector<128xf32>
    %91 = vector.multi_reduction <add>, %89, %cst_57 [0] : vector<8x128xf32> to vector<128xf32>
    %92 = vector.shape_cast %91 : vector<128xf32> to vector<1x128xf32>
    %93 = arith.addf %84, %92 : vector<1x128xf32>
    %94 = arith.mulf %89, %89 : vector<8x128xf32>
    %cst_58 = arith.constant dense<0.000000e+00> : vector<128xf32>
    %95 = vector.multi_reduction <add>, %94, %cst_58 [0] : vector<8x128xf32> to vector<128xf32>
    %96 = vector.shape_cast %95 : vector<128xf32> to vector<1x128xf32>
    %97 = arith.addf %85, %96 : vector<1x128xf32>
    %cst_59 = arith.constant 1.250000e-01 : f32
    %98 = vector.broadcast %cst_59 : f32 to vector<1x128xf32>
    %99 = arith.mulf %93, %98 : vector<1x128xf32>
    %cst_60 = arith.constant 1.250000e-01 : f32
    %100 = vector.broadcast %cst_60 : f32 to vector<1x128xf32>
    %101 = arith.mulf %97, %100 : vector<1x128xf32>
    %102 = arith.mulf %99, %99 : vector<1x128xf32>
    %103 = arith.subf %101, %102 : vector<1x128xf32>
    %cst_61 = arith.constant 9.99999974E-6 : f32
    %104 = vector.broadcast %cst_61 : f32 to vector<1x128xf32>
    %105 = arith.addf %103, %104 : vector<1x128xf32>
    %106 = math.rsqrt %105 : vector<1x128xf32>
    %107 = arith.mulf %82, %106 : vector<1x128xf32>
    %108 = arith.mulf %99, %107 : vector<1x128xf32>
    %109 = arith.subf %83, %108 : vector<1x128xf32>
    %c0_62 = arith.constant 0 : index
    %c0_63 = arith.constant 0 : index
    %110 = vector.load %arg7[%c0_62, %c0_63] : memref<8x128xf32, #tpu.memory_space<vmem>>, vector<8x128xf32>
    %111 = vector.broadcast %107 : vector<1x128xf32> to vector<8x128xf32>
    %112 = arith.mulf %110, %111 : vector<8x128xf32>
    %113 = vector.broadcast %109 : vector<1x128xf32> to vector<8x128xf32>
    %114 = arith.addf %112, %113 : vector<8x128xf32>
    %cst_64 = arith.constant 0.000000e+00 : f32
    %115 = vector.broadcast %cst_64 : f32 to vector<8x128xf32>
    %116 = arith.maximumf %114, %115 : vector<8x128xf32>
    %117 = arith.truncf %116 : vector<8x128xf32> to vector<8x128xbf16>
    %c0_65 = arith.constant 0 : index
    %c0_66 = arith.constant 0 : index
    %118 = vector.load %arg8[%c0_65, %c0_66] : memref<8x128xbf16, #tpu.memory_space<vmem>>, vector<8x128xbf16>
    tpu.vector_store %arg8[%c0_65, %c0_66], %117 {strides = array<i32>} : memref<8x128xbf16, #tpu.memory_space<vmem>>, vector<8x128xbf16>,
    %c2_67 = arith.constant 2 : index
    %c0_68 = arith.constant 0 : index
    %c0_69 = arith.constant 0 : index
    %119 = vector.load %arg2[%c2_67, %c0_68, %c0_69] : memref<3x128x128xbf16, #tpu.memory_space<vmem>>, vector<1x128x128xbf16>
    %120 = vector.shape_cast %119 : vector<1x128x128xbf16> to vector<128x128xbf16>
    %c3 = arith.constant 3 : index
    %c0_70 = arith.constant 0 : index
    %121 = vector.load %arg4[%c3, %c0_70] : memref<16x128xf32, #tpu.memory_space<vmem>>, vector<1x128xf32>
    %c7 = arith.constant 7 : index
    %c0_71 = arith.constant 0 : index
    %122 = vector.load %arg4[%c7, %c0_71] : memref<16x128xf32, #tpu.memory_space<vmem>>, vector<1x128xf32>
    %c11 = arith.constant 11 : index
    %c0_72 = arith.constant 0 : index
    %123 = vector.load %arg4[%c11, %c0_72] : memref<16x128xf32, #tpu.memory_space<vmem>>, vector<1x128xf32>
    %cst_73 = arith.constant 0.000000e+00 : f32
    %124 = vector.broadcast %cst_73 : f32 to vector<1x128xf32>
    %cst_74 = arith.constant 0.000000e+00 : f32
    %125 = vector.broadcast %cst_74 : f32 to vector<1x128xf32>
    %c0_75 = arith.constant 0 : index
    %c0_76 = arith.constant 0 : index
    %126 = vector.load %arg8[%c0_75, %c0_76] : memref<8x128xbf16, #tpu.memory_space<vmem>>, vector<8x128xbf16>
    %cst_77 = arith.constant dense<0.000000e+00> : vector<8x128xf32>
    %127 = tpu.matmul %126, %120, %cst_77 {dimension_numbers = #tpu.dot_dimension_numbers<[1], [0], [0], [1], [0, 0, 1, 1], [], []>} : vector<8x128xbf16>, vector<128x128xbf16>, vector<8x128xf32> -> vector<8x128xf32>
    %128 = vector.broadcast %121 : vector<1x128xf32> to vector<8x128xf32>
    %129 = arith.addf %127, %128 : vector<8x128xf32>
    %c0_78 = arith.constant 0 : index
    %c0_79 = arith.constant 0 : index
    %130 = vector.load %arg7[%c0_78, %c0_79] : memref<8x128xf32, #tpu.memory_space<vmem>>, vector<8x128xf32>
    tpu.vector_store %arg7[%c0_78, %c0_79], %129 {strides = array<i32>} : memref<8x128xf32, #tpu.memory_space<vmem>>, vector<8x128xf32>,
    %cst_80 = arith.constant dense<0.000000e+00> : vector<128xf32>
    %131 = vector.multi_reduction <add>, %129, %cst_80 [0] : vector<8x128xf32> to vector<128xf32>
    %132 = vector.shape_cast %131 : vector<128xf32> to vector<1x128xf32>
    %133 = arith.addf %124, %132 : vector<1x128xf32>
    %134 = arith.mulf %129, %129 : vector<8x128xf32>
    %cst_81 = arith.constant dense<0.000000e+00> : vector<128xf32>
    %135 = vector.multi_reduction <add>, %134, %cst_81 [0] : vector<8x128xf32> to vector<128xf32>
    %136 = vector.shape_cast %135 : vector<128xf32> to vector<1x128xf32>
    %137 = arith.addf %125, %136 : vector<1x128xf32>
    %cst_82 = arith.constant 1.250000e-01 : f32
    %138 = vector.broadcast %cst_82 : f32 to vector<1x128xf32>
    %139 = arith.mulf %133, %138 : vector<1x128xf32>
    %cst_83 = arith.constant 1.250000e-01 : f32
    %140 = vector.broadcast %cst_83 : f32 to vector<1x128xf32>
    %141 = arith.mulf %137, %140 : vector<1x128xf32>
    %142 = arith.mulf %139, %139 : vector<1x128xf32>
    %143 = arith.subf %141, %142 : vector<1x128xf32>
    %cst_84 = arith.constant 9.99999974E-6 : f32
    %144 = vector.broadcast %cst_84 : f32 to vector<1x128xf32>
    %145 = arith.addf %143, %144 : vector<1x128xf32>
    %146 = math.rsqrt %145 : vector<1x128xf32>
    %147 = arith.mulf %122, %146 : vector<1x128xf32>
    %148 = arith.mulf %139, %147 : vector<1x128xf32>
    %149 = arith.subf %123, %148 : vector<1x128xf32>
    %c0_85 = arith.constant 0 : index
    %c0_86 = arith.constant 0 : index
    %150 = vector.load %arg7[%c0_85, %c0_86] : memref<8x128xf32, #tpu.memory_space<vmem>>, vector<8x128xf32>
    %151 = vector.broadcast %147 : vector<1x128xf32> to vector<8x128xf32>
    %152 = arith.mulf %150, %151 : vector<8x128xf32>
    %153 = vector.broadcast %149 : vector<1x128xf32> to vector<8x128xf32>
    %154 = arith.addf %152, %153 : vector<8x128xf32>
    %cst_87 = arith.constant 0.000000e+00 : f32
    %155 = vector.broadcast %cst_87 : f32 to vector<8x128xf32>
    %156 = arith.maximumf %154, %155 : vector<8x128xf32>
    %157 = arith.truncf %156 : vector<8x128xf32> to vector<8x128xbf16>
    %c0_88 = arith.constant 0 : index
    %c0_89 = arith.constant 0 : index
    %158 = vector.load %arg8[%c0_88, %c0_89] : memref<8x128xbf16, #tpu.memory_space<vmem>>, vector<8x128xbf16>
    tpu.vector_store %arg8[%c0_88, %c0_89], %157 {strides = array<i32>} : memref<8x128xbf16, #tpu.memory_space<vmem>>, vector<8x128xbf16>,
    %c0_90 = arith.constant 0 : index
    %c0_91 = arith.constant 0 : index
    %159 = vector.load %arg3[%c0_90, %c0_91] : memref<8x128xbf16, #tpu.memory_space<vmem>>, vector<8x128xbf16>
    %c0_92 = arith.constant 0 : index
    %c0_93 = arith.constant 0 : index
    %160 = vector.load %arg5[%c0_92, %c0_93] : memref<8x1xf32, #tpu.memory_space<vmem>>, vector<8x1xf32>
    %c0_94 = arith.constant 0 : index
    %c0_95 = arith.constant 0 : index
    %161 = vector.load %arg8[%c0_94, %c0_95] : memref<8x128xbf16, #tpu.memory_space<vmem>>, vector<8x128xbf16>
    %cst_96 = arith.constant dense<0.000000e+00> : vector<8x8xf32>
    %162 = tpu.matmul %159, %161, %cst_96 {dimension_numbers = #tpu.dot_dimension_numbers<[1], [1], [0], [0], [0, 0, 1, 0], [], []>} : vector<8x128xbf16>, vector<8x128xbf16>, vector<8x8xf32> -> vector<8x8xf32>
    %163 = vector.broadcast %160 : vector<8x1xf32> to vector<8x8xf32>
    %164 = arith.addf %162, %163 : vector<8x8xf32>
    %c0_97 = arith.constant 0 : index
    %c0_98 = arith.constant 0 : index
    %165 = vector.load %arg6[%c0_97, %c0_98] : memref<8x8xf32, #tpu.memory_space<vmem>>, vector<8x8xf32>
    tpu.vector_store %arg6[%c0_97, %c0_98], %164 {strides = array<i32>} : memref<8x8xf32, #tpu.memory_space<vmem>>, vector<8x8xf32>,
    return
  }
}

</mosaic_0001>

<llo_original>
// kernel: simple_classification_forward.1
$region0: #{simple_classification_forward.1}
  #allocation0 [shape = 'u32[]', space=smem, size = 0x4, offset = 0x4, fixed_abs, tag = 'smem constant byte address 0x4 - core index']
  #allocation1 [shape = 'u32[144,128]{1,0:T(1,128)}', space=vmem, size = 0x12000, scoped, tag = 'internal scratch']
  #allocation2 [shape = 'f32[8,128]{1,0:T(8,128)}', space=vmem, size = 0x1000, scoped, tag = 'scratch operand']
  #allocation3 [shape = 'bf16[8,128]{1,0:T(8,128)(2,1)}', space=vmem, size = 0x800, scoped, tag = 'scratch operand']
  %s0 = inlined_call_operand.hbm [shape: f32[8,30], index: 0, kind: input, shape index: {}]
  %s1 = inlined_call_operand.hbm [shape: f32[30,128], index: 1, kind: input, shape index: {}]
  %s2 = inlined_call_operand.hbm [shape: bf16[3,128,128], index: 2, kind: input, shape index: {}]
  %s3 = inlined_call_operand.hbm [shape: bf16[8,128], index: 3, kind: input, shape index: {}]
  %s4 = inlined_call_operand.vmem [shape: f32[16,128], index: 4, kind: input, shape index: {}]
  %s5 = inlined_call_operand.vmem [shape: f32[8,1], index: 5, kind: input, shape index: {}]
  %s6 = inlined_call_operand.vmem [shape: f32[8,8], index: 6, kind: output, shape index: {}]
  %s7 = sld [smem:[#allocation0]]
  $region50: #{simple_classification_forward.1} parent=0
    _
  %s9 = ssub.s32 1, %s7
  %s10 = scalar_select 0, %s9, %s7
  $region1: #{simple_classification_forward.1} parent=0
    #allocation4 [shape = 'u8[4096]{0}', space=vmem, size = 0x1000, scoped, tag = 'input window, operand 0, single buffered']
    #allocation5 [shape = 's32[1]{0}', space=sflag, size = 0x4, scoped, tag = 'scoped memory for simple_classification_forward.1']
    #allocation6 [shape = 'u8[16384]{0}', space=vmem, size = 0x4000, scoped, tag = 'input window, operand 1, single buffered']
    #allocation7 [shape = 's32[1]{0}', space=sflag, size = 0x4, scoped, tag = 'scoped memory for simple_classification_forward.1']
    #allocation8 [shape = 'u8[98304]{0}', space=vmem, size = 0x18000, scoped, tag = 'input window, operand 2, single buffered']
    #allocation9 [shape = 'u8[2048]{0}', space=vmem, size = 0x800, scoped, tag = 'input window, operand 3, single buffered']
    #allocation10 [shape = 's32[1]{0}', space=sflag, size = 0x4, scoped, tag = 'scoped memory for simple_classification_forward.1']
    %11 = vsyncpa [#allocation5], 0
    %12 = vsyncpa [#allocation7], 0
    %13 = vsyncpa [#allocation10], 0
    // Predicated region
    $region2: #{simple_classification_forward.1} parent=1 // pred_check
      _
    $region3: #{simple_classification_forward.1} parent=1 // pred_check_branch
      %15 = sbr.rel (0) target = $region5
    $region4: #{simple_classification_forward.1} parent=1 // pred_region
      %s17 = ssub.s32 128, 128
      %18 = vsyncadd [#allocation5], %s17
      %s20 = sshll.u32 [#allocation4], 4
      %s21 = int_to_ptr.vmem [resolvable:$true] %s20
      %23 = dma.hbm_to_vmem [thread:$0]  %s0, 128, %s21, [#allocation5]
    $region5: #{simple_classification_forward.1} parent=1 // pred_fallthru
      _
    // Predicated region
    $region6: #{simple_classification_forward.1} parent=1 // pred_check
      _
    $region7: #{simple_classification_forward.1} parent=1 // pred_check_branch
      %25 = sbr.rel (0) target = $region9
    $region8: #{simple_classification_forward.1} parent=1 // pred_region
      %s27 = ssub.s32 512, 512
      %28 = vsyncadd [#allocation7], %s27
      %s29 = sshll.u32 [#allocation6], 4
      %s30 = int_to_ptr.vmem [resolvable:$true] %s29
      %35 = dma.hbm_to_vmem [thread:$0]  %s1, 512, %s30, [#allocation7], 128, 128, 8
    $region9: #{simple_classification_forward.1} parent=1 // pred_fallthru
      _
    // Predicated region
    $region10: #{simple_classification_forward.1} parent=1 // pred_check
      _
    $region11: #{simple_classification_forward.1} parent=1 // pred_check_branch
      %37 = sbr.rel (0) target = $region13
    $region12: #{simple_classification_forward.1} parent=1 // pred_region
      %s39 = ssub.s32 3072, 3072
      %40 = vsyncadd [#allocation7], %s39
      %s41 = sshll.u32 [#allocation8], 4
      %s42 = int_to_ptr.vmem [resolvable:$true] %s41
      %47 = dma.hbm_to_vmem [thread:$0]  %s2, 3072, %s42, [#allocation7], 64, 64, 4
    $region13: #{simple_classification_forward.1} parent=1 // pred_fallthru
      _
    // Predicated region
    $region14: #{simple_classification_forward.1} parent=1 // pred_check
      _
    $region15: #{simple_classification_forward.1} parent=1 // pred_check_branch
      %49 = sbr.rel (0) target = $region17
    $region16: #{simple_classification_forward.1} parent=1 // pred_region
      %s51 = ssub.s32 64, 64
      %52 = vsyncadd [#allocation10], %s51
      %s54 = sshll.u32 [#allocation9], 4
      %s55 = int_to_ptr.vmem [resolvable:$true] %s54
      %57 = dma.hbm_to_vmem [thread:$0]  %s3, 64, %s55, [#allocation10]
    $region17: #{simple_classification_forward.1} parent=1 // pred_fallthru
      _
    // Predicated region
    $region18: #{simple_classification_forward.1} parent=1 // pred_check
      _
    $region19: #{simple_classification_forward.1} parent=1 // pred_check_branch
      %59 = sbr.rel (0) target = $region21
    $region20: #{simple_classification_forward.1} parent=1 // pred_region
      _
    $region21: #{simple_classification_forward.1} parent=1 // pred_fallthru
      _
    // Predicated region
    $region22: #{simple_classification_forward.1} parent=1 // pred_check
      _
    $region23: #{simple_classification_forward.1} parent=1 // pred_check_branch
      %61 = sbr.rel (0) target = $region25
    $region24: #{simple_classification_forward.1} parent=1 // pred_region
      _
    $region25: #{simple_classification_forward.1} parent=1 // pred_fallthru
      _
    // Predicated region
    $region26: #{simple_classification_forward.1} parent=1 // pred_check
      _
    $region27: #{simple_classification_forward.1} parent=1 // pred_check_branch
      %63 = sbr.rel (0) target = $region29
    $region28: #{simple_classification_forward.1} parent=1 // pred_region
      %64 = dma.done [#allocation5], 128
    $region29: #{simple_classification_forward.1} parent=1 // pred_fallthru
      _
    // Predicated region
    $region30: #{simple_classification_forward.1} parent=1 // pred_check
      _
    $region31: #{simple_classification_forward.1} parent=1 // pred_check_branch
      %66 = sbr.rel (0) target = $region33
    $region32: #{simple_classification_forward.1} parent=1 // pred_region
      %67 = dma.done [#allocation7], 512
    $region33: #{simple_classification_forward.1} parent=1 // pred_fallthru
      _
    // Predicated region
    $region34: #{simple_classification_forward.1} parent=1 // pred_check
      _
    $region35: #{simple_classification_forward.1} parent=1 // pred_check_branch
      %69 = sbr.rel (0) target = $region37
    $region36: #{simple_classification_forward.1} parent=1 // pred_region
      %70 = dma.done [#allocation7], 3072
    $region37: #{simple_classification_forward.1} parent=1 // pred_fallthru
      _
    // Predicated region
    $region38: #{simple_classification_forward.1} parent=1 // pred_check
      _
    $region39: #{simple_classification_forward.1} parent=1 // pred_check_branch
      %72 = sbr.rel (0) target = $region41
    $region40: #{simple_classification_forward.1} parent=1 // pred_region
      %73 = dma.done [#allocation10], 64
    $region41: #{simple_classification_forward.1} parent=1 // pred_fallthru
      _
    %v75 = vld [vmem:[#allocation6] sm:$0xff]
    %v76 = vld [vmem:[#allocation6 + $0x8] sm:$0xff]
    %v77 = vld [vmem:[#allocation6 + $0x10] sm:$0xff]
    %v78 = vld [vmem:[#allocation6 + $0x18] sm:$0x3f]
    %v79 = vld [vmem:[%s4] sm:$0x1]
    %v80 = vld [vmem:[%s4 + $0x4] sm:$0x1]
    %v81 = vld [vmem:[%s4 + $0x8] sm:$0x1]
    %v82 = vld [vmem:[#allocation4] sm:$0xff]
    %v83 = vlaneseq
    %v84 = vshrl.u32 %v83, 7
    %v85 = vsub.s32 0, %v84
    %v86 = vrot.slane %v79, %v85
    %vm87 = vcmask 244736
    %v89 = vsel %vm87, %v82, 0
    %vm91 = vcmask 1045504
    %v93 = vsel %vm91, %v78, 0
    %95 = vmatprep.subr.mxu0 0.0
    %96 = vmatpush1.msra.mxu0 0.0
    %97 = vmatprep.subr.mxu0 0.0
    %98 = vmatpush1.msra.mxu0 0.0
    %99 = vmatprep.subr.mxu0 0.0
    %100 = vmatpush1.msra.mxu0 0.0
    %101 = vmatprep.subr.mxu0 0.0
    %102 = vmatpush1.msra.mxu0 0.0
    %103 = vmatprep.subr.mxu0 0.0
    %104 = vmatpush1.msra.mxu0 0.0
    %105 = vmatprep.subr.mxu0 0.0
    %106 = vmatpush1.msra.mxu0 0.0
    %107 = vmatprep.subr.mxu0 0.0
    %108 = vmatpush1.msra.mxu0 0.0
    %109 = vmatprep.subr.mxu0 0.0
    %110 = vmatpush1.msra.mxu0 0.0
    %111 = vmatprep.subr.mxu0 0.0
    %112 = vmatpush1.msra.mxu0 0.0
    %113 = vmatprep.subr.mxu0 0.0
    %114 = vmatpush1.msra.mxu0 0.0
    %115 = vmatprep.subr.mxu0 0.0
    %116 = vmatpush1.msra.mxu0 0.0
    %117 = vmatprep.subr.mxu0 0.0
    %118 = vmatpush1.msra.mxu0 0.0
    %119 = vmatprep.subr.mxu0 0.0
    %120 = vmatpush1.msra.mxu0 %v93
    %121 = vmatprep.subr.mxu0 0.0
    %122 = vmatpush1.msra.mxu0 %v77
    %123 = vmatprep.subr.mxu0 0.0
    %124 = vmatpush1.msra.mxu0 %v76
    %125 = vmatprep.subr.mxu0 0.0
    %126 = vmatpush1.msra.mxu0 %v75
    %127 = vmatprep.subr.mxu0 0.0
    %128 = vmatpush2.msra.mxu0 0.0
    %129 = vmatprep.subr.mxu0 0.0
    %130 = vmatpush2.msra.mxu0 0.0
    %131 = vmatprep.subr.mxu0 0.0
    %132 = vmatpush2.msra.mxu0 0.0
    %133 = vmatprep.subr.mxu0 0.0
    %134 = vmatpush2.msra.mxu0 0.0
    %135 = vmatprep.subr.mxu0 0.0
    %136 = vmatpush2.msra.mxu0 0.0
    %137 = vmatprep.subr.mxu0 0.0
    %138 = vmatpush2.msra.mxu0 0.0
    %139 = vmatprep.subr.mxu0 0.0
    %140 = vmatpush2.msra.mxu0 0.0
    %141 = vmatprep.subr.mxu0 0.0
    %142 = vmatpush2.msra.mxu0 0.0
    %143 = vmatprep.subr.mxu0 0.0
    %144 = vmatpush2.msra.mxu0 0.0
    %145 = vmatprep.subr.mxu0 0.0
    %146 = vmatpush2.msra.mxu0 0.0
    %147 = vmatprep.subr.mxu0 0.0
    %148 = vmatpush2.msra.mxu0 0.0
    %149 = vmatprep.subr.mxu0 0.0
    %150 = vmatpush2.msra.mxu0 0.0
    %151 = vmatprep.subr.mxu0 0.0
    %152 = vmatpush2.msra.mxu0 0.0
    %153 = vmatprep.subr.mxu0 0.0
    %154 = vmatpush2.msra.mxu0 0.0
    %155 = vmatprep.subr.mxu0 0.0
    %156 = vmatpush2.msra.mxu0 0.0
    %157 = vmatprep.subr.mxu0 0.0
    %158 = vmatpush2.msra.mxu0 0.0
    %159 = vmatprep.mubr.f32.mxu0 0.0
    %160 = vmatmul.mubr.f32.gmra.mxu0 %v89
    %v161 = vpop.f32.mrf.mxu0
    %v162 = vadd.f32 %v86, %v161
    %v163 = vpop.f32.mrf.mxu0
    %164 = vdwg.mxu0
    %165 = vst [vmem:[#allocation2] sm:$0xff] %v162
    %v166 = vrot.slane %v162, 4
    %v167 = vadd.f32 %v162, %v166
    %v168 = vrot.slane %v167, 2
    %v169 = vadd.f32 %v167, %v168
    %v170 = vrot.slane %v169, 1
    %v171 = vadd.f32 %v169, %v170
    %v172 = vadd.f32 %v171, 0.0
    %v173 = vmul.f32 %v162, %v162
    %v174 = vrot.slane %v173, 4
    %v175 = vadd.f32 %v173, %v174
    %v176 = vrot.slane %v175, 2
    %v177 = vadd.f32 %v175, %v176
    %v178 = vrot.slane %v177, 1
    %v179 = vadd.f32 %v177, %v178
    %v180 = vadd.f32 %v179, 0.0
    %v181 = vmul.f32 %v172, 0.125
    %v182 = vmul.f32 %v180, 0.125
    %v183 = vmul.f32 %v181, %v181
    %v184 = vsub.f32 %v182, %v183
    %v185 = vadd.f32 %v184, 1e-05
    %v186 = vrsqrt.pop %v185
    %v187 = vmul.f32 %v80, %v186
    %v188 = vmul.f32 %v181, %v187
    %v189 = vsub.f32 %v81, %v188
    %v190 = vld [vmem:[#allocation2] sm:$0xff]
    %v191 = vlaneseq
    %v192 = vshrl.u32 %v191, 7
    %v193 = vsub.s32 0, %v192
    %v194 = vrot.slane %v187, %v193
    %v195 = vmul.f32 %v190, %v194
    %v196 = vlaneseq
    %v197 = vshrl.u32 %v196, 7
    %v198 = vsub.s32 0, %v197
    %v199 = vrot.slane %v189, %v198
    %v200 = vadd.f32 %v195, %v199
    %v201 = vmax.f32 %v200, 0.0
    %v202 = vpack.c.bf16 %v201, %v201
    %203 = vst [vmem:[#allocation3] sm:$0xf] %v202
    %v204 = vld [vmem:[#allocation8] sm:$0xf]
    %v205 = vld [vmem:[#allocation8 + $0x4] sm:$0xf]
    %v206 = vld [vmem:[#allocation8 + $0x8] sm:$0xf]
    %v207 = vld [vmem:[#allocation8 + $0xc] sm:$0xf]
    %v208 = vld [vmem:[#allocation8 + $0x10] sm:$0xf]
    %v209 = vld [vmem:[#allocation8 + $0x14] sm:$0xf]
    %v210 = vld [vmem:[#allocation8 + $0x18] sm:$0xf]
    %v211 = vld [vmem:[#allocation8 + $0x1c] sm:$0xf]
    %v212 = vld [vmem:[#allocation8 + $0x20] sm:$0xf]
    %v213 = vld [vmem:[#allocation8 + $0x24] sm:$0xf]
    %v214 = vld [vmem:[#allocation8 + $0x28] sm:$0xf]
    %v215 = vld [vmem:[#allocation8 + $0x2c] sm:$0xf]
    %v216 = vld [vmem:[#allocation8 + $0x30] sm:$0xf]
    %v217 = vld [vmem:[#allocation8 + $0x34] sm:$0xf]
    %v218 = vld [vmem:[#allocation8 + $0x38] sm:$0xf]
    %v219 = vld [vmem:[#allocation8 + $0x3c] sm:$0xf]
    %v220 = vld [vmem:[%s4 + $0x1] sm:$0x1]
    %v221 = vld [vmem:[%s4 + $0x5] sm:$0x1]
    %v222 = vld [vmem:[%s4 + $0x9] sm:$0x1]
    %v223 = vld [vmem:[#allocation3] sm:$0xf]
    %v224 = vlaneseq
    %v225 = vshrl.u32 %v224, 7
    %v226 = vsub.s32 0, %v225
    %v227 = vrot.slane %v220, %v226
    %v244 = vunpack.c.l.b16 %v204
    %v245 = vunpack.c.l.b16 %v205
    %v246 = vunpack.c.l.b16 %v206
    %v247 = vunpack.c.l.b16 %v207
    %v248 = vunpack.c.l.b16 %v208
    %v249 = vunpack.c.l.b16 %v209
    %v250 = vunpack.c.l.b16 %v210
    %v251 = vunpack.c.l.b16 %v211
    %v252 = vunpack.c.l.b16 %v212
    %v253 = vunpack.c.l.b16 %v213
    %v254 = vunpack.c.l.b16 %v214
    %v255 = vunpack.c.l.b16 %v215
    %v256 = vunpack.c.l.b16 %v216
    %v257 = vunpack.c.l.b16 %v217
    %v258 = vunpack.c.l.b16 %v218
    %v259 = vunpack.c.l.b16 %v219
    %v260 = vpack.c.b16 %v245, %v244
    %v261 = vpack.c.b16 %v247, %v246
    %v262 = vpack.c.b16 %v249, %v248
    %v263 = vpack.c.b16 %v251, %v250
    %v264 = vpack.c.b16 %v253, %v252
    %v265 = vpack.c.b16 %v255, %v254
    %v266 = vpack.c.b16 %v257, %v256
    %v267 = vpack.c.b16 %v259, %v258
    %276 = vmatprep.subr.bf16.mxu0 0
    %277 = vmatpush1.bf16.msra.mxu0 %v267
    %278 = vmatprep.subr.bf16.mxu0 0
    %279 = vmatpush1.bf16.msra.mxu0 %v266
    %280 = vmatprep.subr.bf16.mxu0 0
    %281 = vmatpush1.bf16.msra.mxu0 %v265
    %282 = vmatprep.subr.bf16.mxu0 0
    %283 = vmatpush1.bf16.msra.mxu0 %v264
    %284 = vmatprep.subr.bf16.mxu0 0
    %285 = vmatpush1.bf16.msra.mxu0 %v263
    %286 = vmatprep.subr.bf16.mxu0 0
    %287 = vmatpush1.bf16.msra.mxu0 %v262
    %288 = vmatprep.subr.bf16.mxu0 0
    %289 = vmatpush1.bf16.msra.mxu0 %v261
    %290 = vmatprep.subr.bf16.mxu0 0
    %291 = vmatpush1.bf16.msra.mxu0 %v260
    %292 = vmatprep.subr.bf16.mxu0 0
    %293 = vmatpush2.bf16.msra.mxu0 0
    %294 = vmatprep.subr.bf16.mxu0 0
    %295 = vmatpush2.bf16.msra.mxu0 0
    %296 = vmatprep.subr.bf16.mxu0 0
    %297 = vmatpush2.bf16.msra.mxu0 0
    %298 = vmatprep.subr.bf16.mxu0 0
    %299 = vmatpush2.bf16.msra.mxu0 0
    %300 = vmatprep.subr.bf16.mxu0 0
    %301 = vmatpush2.bf16.msra.mxu0 0
    %302 = vmatprep.subr.bf16.mxu0 0
    %303 = vmatpush2.bf16.msra.mxu0 0
    %304 = vmatprep.subr.bf16.mxu0 0
    %305 = vmatpush2.bf16.msra.mxu0 0
    %306 = vmatprep.subr.bf16.mxu0 0
    %307 = vmatpush2.bf16.msra.mxu0 0
    %308 = vmatprep.mubr.bf16.mxu0 0
    %309 = vmatmul.mubr.bf16.gmra.mxu0 %v223
    %v310 = vpop.f32.mrf.mxu0
    %v311 = vadd.f32 %v227, %v310
    %v312 = vpop.f32.mrf.mxu0
    %v313 = vpop.f32.mrf.mxu0
    %v314 = vpop.f32.mrf.mxu0
    %315 = vdwg.mxu0
    %316 = vst [vmem:[#allocation2] sm:$0xff] %v311
    %v317 = vrot.slane %v311, 4
    %v318 = vadd.f32 %v311, %v317
    %v319 = vrot.slane %v318, 2
    %v320 = vadd.f32 %v318, %v319
    %v321 = vrot.slane %v320, 1
    %v322 = vadd.f32 %v320, %v321
    %v323 = vadd.f32 %v322, 0.0
    %v324 = vmul.f32 %v311, %v311
    %v325 = vrot.slane %v324, 4
    %v326 = vadd.f32 %v324, %v325
    %v327 = vrot.slane %v326, 2
    %v328 = vadd.f32 %v326, %v327
    %v329 = vrot.slane %v328, 1
    %v330 = vadd.f32 %v328, %v329
    %v331 = vadd.f32 %v330, 0.0
    %v332 = vmul.f32 %v323, 0.125
    %v333 = vmul.f32 %v331, 0.125
    %v334 = vmul.f32 %v332, %v332
    %v335 = vsub.f32 %v333, %v334
    %v336 = vadd.f32 %v335, 1e-05
    %v337 = vrsqrt.pop %v336
    %v338 = vmul.f32 %v221, %v337
    %v339 = vmul.f32 %v332, %v338
    %v340 = vsub.f32 %v222, %v339
    %v341 = vld [vmem:[#allocation2] sm:$0xff]
    %v342 = vlaneseq
    %v343 = vshrl.u32 %v342, 7
    %v344 = vsub.s32 0, %v343
    %v345 = vrot.slane %v338, %v344
    %v346 = vmul.f32 %v341, %v345
    %v347 = vlaneseq
    %v348 = vshrl.u32 %v347, 7
    %v349 = vsub.s32 0, %v348
    %v350 = vrot.slane %v340, %v349
    %v351 = vadd.f32 %v346, %v350
    %v352 = vmax.f32 %v351, 0.0
    %v353 = vpack.c.bf16 %v352, %v352
    %354 = vst [vmem:[#allocation3] sm:$0xf] %v353
    %s355 = scalar_lea.vmem [#allocation8], 64
    %v356 = vld [vmem:[%s355] sm:$0xf]
    %v357 = vld [vmem:[%s355 + $0x4] sm:$0xf]
    %v358 = vld [vmem:[%s355 + $0x8] sm:$0xf]
    %v359 = vld [vmem:[%s355 + $0xc] sm:$0xf]
    %v360 = vld [vmem:[%s355 + $0x10] sm:$0xf]
    %v361 = vld [vmem:[%s355 + $0x14] sm:$0xf]
    %v362 = vld [vmem:[%s355 + $0x18] sm:$0xf]
    %v363 = vld [vmem:[%s355 + $0x1c] sm:$0xf]
    %v364 = vld [vmem:[%s355 + $0x20] sm:$0xf]
    %v365 = vld [vmem:[%s355 + $0x24] sm:$0xf]
    %v366 = vld [vmem:[%s355 + $0x28] sm:$0xf]
    %v367 = vld [vmem:[%s355 + $0x2c] sm:$0xf]
    %v368 = vld [vmem:[%s355 + $0x30] sm:$0xf]
    %v369 = vld [vmem:[%s355 + $0x34] sm:$0xf]
    %v370 = vld [vmem:[%s355 + $0x38] sm:$0xf]
    %v371 = vld [vmem:[%s355 + $0x3c] sm:$0xf]
    %v372 = vld [vmem:[%s4 + $0x2] sm:$0x1]
    %v373 = vld [vmem:[%s4 + $0x6] sm:$0x1]
    %v374 = vld [vmem:[%s4 + $0xa] sm:$0x1]
    %v375 = vld [vmem:[#allocation3] sm:$0xf]
    %v376 = vlaneseq
    %v377 = vshrl.u32 %v376, 7
    %v378 = vsub.s32 0, %v377
    %v379 = vrot.slane %v372, %v378
    %v396 = vunpack.c.l.b16 %v356
    %v397 = vunpack.c.l.b16 %v357
    %v398 = vunpack.c.l.b16 %v358
    %v399 = vunpack.c.l.b16 %v359
    %v400 = vunpack.c.l.b16 %v360
    %v401 = vunpack.c.l.b16 %v361
    %v402 = vunpack.c.l.b16 %v362
    %v403 = vunpack.c.l.b16 %v363
    %v404 = vunpack.c.l.b16 %v364
    %v405 = vunpack.c.l.b16 %v365
    %v406 = vunpack.c.l.b16 %v366
    %v407 = vunpack.c.l.b16 %v367
    %v408 = vunpack.c.l.b16 %v368
    %v409 = vunpack.c.l.b16 %v369
    %v410 = vunpack.c.l.b16 %v370
    %v411 = vunpack.c.l.b16 %v371
    %v412 = vpack.c.b16 %v397, %v396
    %v413 = vpack.c.b16 %v399, %v398
    %v414 = vpack.c.b16 %v401, %v400
    %v415 = vpack.c.b16 %v403, %v402
    %v416 = vpack.c.b16 %v405, %v404
    %v417 = vpack.c.b16 %v407, %v406
    %v418 = vpack.c.b16 %v409, %v408
    %v419 = vpack.c.b16 %v411, %v410
    %428 = vmatprep.subr.bf16.mxu0 0
    %429 = vmatpush1.bf16.msra.mxu0 %v419
    %430 = vmatprep.subr.bf16.mxu0 0
    %431 = vmatpush1.bf16.msra.mxu0 %v418
    %432 = vmatprep.subr.bf16.mxu0 0
    %433 = vmatpush1.bf16.msra.mxu0 %v417
    %434 = vmatprep.subr.bf16.mxu0 0
    %435 = vmatpush1.bf16.msra.mxu0 %v416
    %436 = vmatprep.subr.bf16.mxu0 0
    %437 = vmatpush1.bf16.msra.mxu0 %v415
    %438 = vmatprep.subr.bf16.mxu0 0
    %439 = vmatpush1.bf16.msra.mxu0 %v414
    %440 = vmatprep.subr.bf16.mxu0 0
    %441 = vmatpush1.bf16.msra.mxu0 %v413
    %442 = vmatprep.subr.bf16.mxu0 0
    %443 = vmatpush1.bf16.msra.mxu0 %v412
    %444 = vmatprep.subr.bf16.mxu0 0
    %445 = vmatpush2.bf16.msra.mxu0 0
    %446 = vmatprep.subr.bf16.mxu0 0
    %447 = vmatpush2.bf16.msra.mxu0 0
    %448 = vmatprep.subr.bf16.mxu0 0
    %449 = vmatpush2.bf16.msra.mxu0 0
    %450 = vmatprep.subr.bf16.mxu0 0
    %451 = vmatpush2.bf16.msra.mxu0 0
    %452 = vmatprep.subr.bf16.mxu0 0
    %453 = vmatpush2.bf16.msra.mxu0 0
    %454 = vmatprep.subr.bf16.mxu0 0
    %455 = vmatpush2.bf16.msra.mxu0 0
    %456 = vmatprep.subr.bf16.mxu0 0
    %457 = vmatpush2.bf16.msra.mxu0 0
    %458 = vmatprep.subr.bf16.mxu0 0
    %459 = vmatpush2.bf16.msra.mxu0 0
    %460 = vmatprep.mubr.bf16.mxu0 0
    %461 = vmatmul.mubr.bf16.gmra.mxu0 %v375
    %v462 = vpop.f32.mrf.mxu0
    %v463 = vadd.f32 %v379, %v462
    %v464 = vpop.f32.mrf.mxu0
    %v465 = vpop.f32.mrf.mxu0
    %v466 = vpop.f32.mrf.mxu0
    %467 = vdwg.mxu0
    %468 = vst [vmem:[#allocation2] sm:$0xff] %v463
    %v469 = vrot.slane %v463, 4
    %v470 = vadd.f32 %v463, %v469
    %v471 = vrot.slane %v470, 2
    %v472 = vadd.f32 %v470, %v471
    %v473 = vrot.slane %v472, 1
    %v474 = vadd.f32 %v472, %v473
    %v475 = vadd.f32 %v474, 0.0
    %v476 = vmul.f32 %v463, %v463
    %v477 = vrot.slane %v476, 4
    %v478 = vadd.f32 %v476, %v477
    %v479 = vrot.slane %v478, 2
    %v480 = vadd.f32 %v478, %v479
    %v481 = vrot.slane %v480, 1
    %v482 = vadd.f32 %v480, %v481
    %v483 = vadd.f32 %v482, 0.0
    %v484 = vmul.f32 %v475, 0.125
    %v485 = vmul.f32 %v483, 0.125
    %v486 = vmul.f32 %v484, %v484
    %v487 = vsub.f32 %v485, %v486
    %v488 = vadd.f32 %v487, 1e-05
    %v489 = vrsqrt.pop %v488
    %v490 = vmul.f32 %v373, %v489
    %v491 = vmul.f32 %v484, %v490
    %v492 = vsub.f32 %v374, %v491
    %v493 = vld [vmem:[#allocation2] sm:$0xff]
    %v494 = vlaneseq
    %v495 = vshrl.u32 %v494, 7
    %v496 = vsub.s32 0, %v495
    %v497 = vrot.slane %v490, %v496
    %v498 = vmul.f32 %v493, %v497
    %v499 = vlaneseq
    %v500 = vshrl.u32 %v499, 7
    %v501 = vsub.s32 0, %v500
    %v502 = vrot.slane %v492, %v501
    %v503 = vadd.f32 %v498, %v502
    %v504 = vmax.f32 %v503, 0.0
    %v505 = vpack.c.bf16 %v504, %v504
    %506 = vst [vmem:[#allocation3] sm:$0xf] %v505
    %s507 = scalar_lea.vmem [#allocation8], 128
    %v508 = vld [vmem:[%s507] sm:$0xf]
    %v509 = vld [vmem:[%s507 + $0x4] sm:$0xf]
    %v510 = vld [vmem:[%s507 + $0x8] sm:$0xf]
    %v511 = vld [vmem:[%s507 + $0xc] sm:$0xf]
    %v512 = vld [vmem:[%s507 + $0x10] sm:$0xf]
    %v513 = vld [vmem:[%s507 + $0x14] sm:$0xf]
    %v514 = vld [vmem:[%s507 + $0x18] sm:$0xf]
    %v515 = vld [vmem:[%s507 + $0x1c] sm:$0xf]
    %v516 = vld [vmem:[%s507 + $0x20] sm:$0xf]
    %v517 = vld [vmem:[%s507 + $0x24] sm:$0xf]
    %v518 = vld [vmem:[%s507 + $0x28] sm:$0xf]
    %v519 = vld [vmem:[%s507 + $0x2c] sm:$0xf]
    %v520 = vld [vmem:[%s507 + $0x30] sm:$0xf]
    %v521 = vld [vmem:[%s507 + $0x34] sm:$0xf]
    %v522 = vld [vmem:[%s507 + $0x38] sm:$0xf]
    %v523 = vld [vmem:[%s507 + $0x3c] sm:$0xf]
    %v524 = vld [vmem:[%s4 + $0x3] sm:$0x1]
    %v525 = vld [vmem:[%s4 + $0x7] sm:$0x1]
    %v526 = vld [vmem:[%s4 + $0xb] sm:$0x1]
    %v527 = vld [vmem:[#allocation3] sm:$0xf]
    %v528 = vlaneseq
    %v529 = vshrl.u32 %v528, 7
    %v530 = vsub.s32 0, %v529
    %v531 = vrot.slane %v524, %v530
    %v548 = vunpack.c.l.b16 %v508
    %v549 = vunpack.c.l.b16 %v509
    %v550 = vunpack.c.l.b16 %v510
    %v551 = vunpack.c.l.b16 %v511
    %v552 = vunpack.c.l.b16 %v512
    %v553 = vunpack.c.l.b16 %v513
    %v554 = vunpack.c.l.b16 %v514
    %v555 = vunpack.c.l.b16 %v515
    %v556 = vunpack.c.l.b16 %v516
    %v557 = vunpack.c.l.b16 %v517
    %v558 = vunpack.c.l.b16 %v518
    %v559 = vunpack.c.l.b16 %v519
    %v560 = vunpack.c.l.b16 %v520
    %v561 = vunpack.c.l.b16 %v521
    %v562 = vunpack.c.l.b16 %v522
    %v563 = vunpack.c.l.b16 %v523
    %v564 = vpack.c.b16 %v549, %v548
    %v565 = vpack.c.b16 %v551, %v550
    %v566 = vpack.c.b16 %v553, %v552
    %v567 = vpack.c.b16 %v555, %v554
    %v568 = vpack.c.b16 %v557, %v556
    %v569 = vpack.c.b16 %v559, %v558
    %v570 = vpack.c.b16 %v561, %v560
    %v571 = vpack.c.b16 %v563, %v562
    %580 = vmatprep.subr.bf16.mxu0 0
    %581 = vmatpush1.bf16.msra.mxu0 %v571
    %582 = vmatprep.subr.bf16.mxu0 0
    %583 = vmatpush1.bf16.msra.mxu0 %v570
    %584 = vmatprep.subr.bf16.mxu0 0
    %585 = vmatpush1.bf16.msra.mxu0 %v569
    %586 = vmatprep.subr.bf16.mxu0 0
    %587 = vmatpush1.bf16.msra.mxu0 %v568
    %588 = vmatprep.subr.bf16.mxu0 0
    %589 = vmatpush1.bf16.msra.mxu0 %v567
    %590 = vmatprep.subr.bf16.mxu0 0
    %591 = vmatpush1.bf16.msra.mxu0 %v566
    %592 = vmatprep.subr.bf16.mxu0 0
    %593 = vmatpush1.bf16.msra.mxu0 %v565
    %594 = vmatprep.subr.bf16.mxu0 0
    %595 = vmatpush1.bf16.msra.mxu0 %v564
    %596 = vmatprep.subr.bf16.mxu0 0
    %597 = vmatpush2.bf16.msra.mxu0 0
    %598 = vmatprep.subr.bf16.mxu0 0
    %599 = vmatpush2.bf16.msra.mxu0 0
    %600 = vmatprep.subr.bf16.mxu0 0
    %601 = vmatpush2.bf16.msra.mxu0 0
    %602 = vmatprep.subr.bf16.mxu0 0
    %603 = vmatpush2.bf16.msra.mxu0 0
    %604 = vmatprep.subr.bf16.mxu0 0
    %605 = vmatpush2.bf16.msra.mxu0 0
    %606 = vmatprep.subr.bf16.mxu0 0
    %607 = vmatpush2.bf16.msra.mxu0 0
    %608 = vmatprep.subr.bf16.mxu0 0
    %609 = vmatpush2.bf16.msra.mxu0 0
    %610 = vmatprep.subr.bf16.mxu0 0
    %611 = vmatpush2.bf16.msra.mxu0 0
    %612 = vmatprep.mubr.bf16.mxu0 0
    %613 = vmatmul.mubr.bf16.gmra.mxu0 %v527
    %v614 = vpop.f32.mrf.mxu0
    %v615 = vadd.f32 %v531, %v614
    %v616 = vpop.f32.mrf.mxu0
    %v617 = vpop.f32.mrf.mxu0
    %v618 = vpop.f32.mrf.mxu0
    %619 = vdwg.mxu0
    %620 = vst [vmem:[#allocation2] sm:$0xff] %v615
    %v621 = vrot.slane %v615, 4
    %v622 = vadd.f32 %v615, %v621
    %v623 = vrot.slane %v622, 2
    %v624 = vadd.f32 %v622, %v623
    %v625 = vrot.slane %v624, 1
    %v626 = vadd.f32 %v624, %v625
    %v627 = vadd.f32 %v626, 0.0
    %v628 = vmul.f32 %v615, %v615
    %v629 = vrot.slane %v628, 4
    %v630 = vadd.f32 %v628, %v629
    %v631 = vrot.slane %v630, 2
    %v632 = vadd.f32 %v630, %v631
    %v633 = vrot.slane %v632, 1
    %v634 = vadd.f32 %v632, %v633
    %v635 = vadd.f32 %v634, 0.0
    %v636 = vmul.f32 %v627, 0.125
    %v637 = vmul.f32 %v635, 0.125
    %v638 = vmul.f32 %v636, %v636
    %v639 = vsub.f32 %v637, %v638
    %v640 = vadd.f32 %v639, 1e-05
    %v641 = vrsqrt.pop %v640
    %v642 = vmul.f32 %v525, %v641
    %v643 = vmul.f32 %v636, %v642
    %v644 = vsub.f32 %v526, %v643
    %v645 = vld [vmem:[#allocation2] sm:$0xff]
    %v646 = vlaneseq
    %v647 = vshrl.u32 %v646, 7
    %v648 = vsub.s32 0, %v647
    %v649 = vrot.slane %v642, %v648
    %v650 = vmul.f32 %v645, %v649
    %v651 = vlaneseq
    %v652 = vshrl.u32 %v651, 7
    %v653 = vsub.s32 0, %v652
    %v654 = vrot.slane %v644, %v653
    %v655 = vadd.f32 %v650, %v654
    %v656 = vmax.f32 %v655, 0.0
    %v657 = vpack.c.bf16 %v656, %v656
    %658 = vst [vmem:[#allocation3] sm:$0xf] %v657
    %v659 = vld [vmem:[#allocation9] sm:$0xf]
    %v660 = vld [vmem:[%s5] sm:$0xff]
    %v661 = vld [vmem:[#allocation3] sm:$0xf]
    %663 = vset.pattern.permute.xlu0 0
    %664 = vperm.xlu0 %663, %v660
    %v665 = vpop.permute.xlu0 %664
    %667 = vmatprep.subr.bf16.mxu0 0
    %668 = vmatpush1.bf16.xpose.msra.mxu0 0
    %669 = vmatprep.subr.bf16.mxu0 0
    %670 = vmatpush1.bf16.xpose.msra.mxu0 0
    %671 = vmatprep.subr.bf16.mxu0 0
    %672 = vmatpush1.bf16.xpose.msra.mxu0 0
    %673 = vmatprep.subr.bf16.mxu0 0
    %674 = vmatpush1.bf16.xpose.msra.mxu0 0
    %675 = vmatprep.subr.bf16.mxu0 0
    %676 = vmatpush1.bf16.xpose.msra.mxu0 0
    %677 = vmatprep.subr.bf16.mxu0 0
    %678 = vmatpush1.bf16.xpose.msra.mxu0 0
    %679 = vmatprep.subr.bf16.mxu0 0
    %680 = vmatpush1.bf16.xpose.msra.mxu0 0
    %681 = vmatprep.subr.bf16.mxu0 0
    %682 = vmatpush1.bf16.xpose.msra.mxu0 %v661
    %683 = vmatprep.subr.bf16.mxu0 0
    %684 = vmatpush2.bf16.xpose.msra.mxu0 0
    %685 = vmatprep.subr.bf16.mxu0 0
    %686 = vmatpush2.bf16.xpose.msra.mxu0 0
    %687 = vmatprep.subr.bf16.mxu0 0
    %688 = vmatpush2.bf16.xpose.msra.mxu0 0
    %689 = vmatprep.subr.bf16.mxu0 0
    %690 = vmatpush2.bf16.xpose.msra.mxu0 0
    %691 = vmatprep.subr.bf16.mxu0 0
    %692 = vmatpush2.bf16.xpose.msra.mxu0 0
    %693 = vmatprep.subr.bf16.mxu0 0
    %694 = vmatpush2.bf16.xpose.msra.mxu0 0
    %695 = vmatprep.subr.bf16.mxu0 0
    %696 = vmatpush2.bf16.xpose.msra.mxu0 0
    %697 = vmatprep.subr.bf16.mxu0 0
    %698 = vmatpush2.bf16.xpose.msra.mxu0 0
    %699 = vmatprep.mubr.bf16.mxu0 0
    %700 = vmatmul.mubr.bf16.gmra.mxu0 %v659
    %v701 = vpop.f32.mrf.mxu0
    %v702 = vadd.f32 %v665, %v701
    %v703 = vpop.f32.mrf.mxu0
    %v704 = vpop.f32.mrf.mxu0
    %v705 = vpop.f32.mrf.mxu0
    %706 = vdwg.mxu0
    %vm707 = vcmask 64512
    %708 = vst.msk [vmem:[%s6] sm:$0xff] %vm707, %v702
    // Predicated region
    $region42: #{simple_classification_forward.1} parent=1 // pred_check
      _
    $region43: #{simple_classification_forward.1} parent=1 // pred_check_branch
      %710 = sbr.rel (0) target = $region45
    $region44: #{simple_classification_forward.1} parent=1 // pred_region
      _
    $region45: #{simple_classification_forward.1} parent=1 // pred_fallthru
      _
    // Predicated region
    $region46: #{simple_classification_forward.1} parent=1 // pred_check
      _
    $region47: #{simple_classification_forward.1} parent=1 // pred_check_branch
      %712 = sbr.rel (0) target = $region49
    $region48: #{simple_classification_forward.1} parent=1 // pred_region
      _
    $region49: #{simple_classification_forward.1} parent=1 // pred_fallthru
      _
    %713 = vsyncpa [#allocation5], 1
    %714 = vsyncpa [#allocation7], 1
    %715 = vsyncpa [#allocation10], 1

</llo_original>
